<compile_context>
chip_gen: v7x
topology: tpu7x:2x2x1
jax: 0.10.0
libtpu: 0.0.40
codegen_flags: <defaults>
</compile_context>

<pallas_src>
import jax
import jax.numpy as jnp
from jax.experimental import pallas as pl
from jax.experimental.pallas import tpu as pltpu

NUM_VIEWS = 4


def _mva_kernel(x_ref, wf_ref, bf_ref, vu_ref, w_ref, out_ref):
    """One view per grid step; output block is resident across the view axis.

    x_ref : (B, HW)   bf16   flattened image of the current view
    wf_ref: (HW, D)   bf16   this view's linear feature weights (CNN stand-in)
    bf_ref: (1, D)    f32    this view's linear feature bias
    vu_ref: (D, 2*Hu) f32    fused, pre-transposed attention gates [V.T | U.T]
    w_ref : (1, Hu)   f32    attention projection w (as a row)
    out_ref: (B, D)   f32    accumulated attention-weighted sum over views
    """
    @pl.when(pl.program_id(0) == 0)
    def _init():
        out_ref[...] = jnp.zeros_like(out_ref)

    # Stand-in per-view feature extractor: Linear(HW -> D) + ReLU.
    # bf16 operands, f32 accumulation on the MXU.
    # NOTE(perf): for tiny production B this matmul could be computed
    # transposed (M = D = 128) to fill the MXU; at demo shapes it is
    # latency-bound either way.  For very large HW, add a K-tiling grid axis.
    feat = jnp.dot(x_ref[...], wf_ref[...], preferred_element_type=jnp.float32)
    feat = jnp.maximum(feat + bf_ref[...], 0.0)                      # (B, D) f32

    # Fused attention gates: one lane-dense (B,D)x(D,2Hu) matmul, no transpose.
    g = jnp.dot(feat, vu_ref[...], preferred_element_type=jnp.float32)  # (B, 2Hu)
    hu = w_ref.shape[1]
    x1 = jnp.tanh(g[:, :hu])                                         # tanh(V @ feat.T).T
    x2 = jax.nn.sigmoid(g[:, hu:])                                   # sigmoid(U @ feat.T).T
    s = jnp.sum(w_ref[...] * (x1 * x2), axis=1, keepdims=True)       # (B, 1) == (w.T @ (x1*x2)).T

    # softmax over the *batch* axis (reference: F.softmax(..., dim=1) on (1, B)).
    s = s - jnp.max(s, axis=0, keepdims=True)
    e = jnp.exp(s)
    inv = pl.reciprocal(jnp.sum(e, axis=0, keepdims=True), approx=True)
    wgt = e * inv                                                    # (B, 1)

    # weight.view(-1, 1) * view, accumulated over the 4 views.
    out_ref[...] += wgt * feat


def multi_views_attention(x, feat_w, feat_b, U, V, w):
    """x: (B, 4, H, W) multi-view input (views along axis 1)."""
    B, nv, Hh, Ww = x.shape
    assert nv == NUM_VIEWS
    HW = Hh * Ww
    D = feat_w.shape[-1]
    Hu = U.shape[0]

    # Glue: reorder views to (V, B, HW) and cast the matmul operands to bf16
    # (halves the HBM->VMEM DMA for x and feat_w).
    # NOTE(perf): keeping the view axis leading in the host layout would avoid
    # this full-HBM-round-trip transpose of x for large inputs.
    xk = jnp.transpose(x, (1, 0, 2, 3)).reshape(nv, B, HW).astype(jnp.bfloat16)
    wf = feat_w.astype(jnp.bfloat16)
    bf = feat_b.reshape(nv, 1, D).astype(jnp.float32)
    # Fused, pre-transposed attention gate params: a single (D, 2*Hu) operand
    # (2*Hu = 128 keeps the gate output lane-dense and MXU passes full).
    vu = jnp.concatenate([V.T, U.T], axis=1).astype(jnp.float32)     # (D, 2Hu)
    w_row = w.reshape(1, Hu).astype(jnp.float32)

    return pl.pallas_call(
        _mva_kernel,
        out_shape=jax.ShapeDtypeStruct((B, D), jnp.float32),
        grid=(NUM_VIEWS,),
        in_specs=[
            pl.BlockSpec((None, B, HW), lambda v: (v, 0, 0)),   # stream one view of x
            pl.BlockSpec((None, HW, D), lambda v: (v, 0, 0)),   # stream one view's weights
            pl.BlockSpec((None, 1, D), lambda v: (v, 0, 0)),    # stream one view's bias
            pl.BlockSpec((D, 2 * Hu), lambda v: (0, 0)),        # gates resident
            pl.BlockSpec((1, Hu), lambda v: (0, 0)),            # w resident
        ],
        out_specs=pl.BlockSpec((B, D), lambda v: (0, 0)),       # accumulator block
        compiler_params=pltpu.CompilerParams(
            dimension_semantics=("arbitrary",),                 # accumulation axis
            vmem_limit_bytes=32 * 1024 * 1024,                  # explicit VMEM budget (v5e..v7x safe)
        ),
    )(xk, wf, bf, vu, w_row)


def _reference(x, feat_w, feat_b, U, V, w):
    """Pure-JAX reference mirroring the PyTorch forward semantics.

    Uses the same bf16-operand / f32-accumulate precision for the big feature
    matmul as the kernel; attention math is done in f32 in the original
    (V @ view.T) orientation, exactly like the PyTorch module.
    """
    B, nv, Hh, Ww = x.shape
    HW = Hh * Ww
    views = jnp.transpose(x, (1, 0, 2, 3)).reshape(nv, B, HW)
    feats = jnp.maximum(
        jnp.einsum(
            "vbh,vhd->vbd",
            views.astype(jnp.bfloat16),
            feat_w.astype(jnp.bfloat16),
            preferred_element_type=jnp.float32,
        )
        + feat_b[:, None, :],
        0.0,
    )  # (4, B, D)
    result = None
    for i in range(nv):
        view = feats[i]                                   # (B, D)
        x1 = jnp.tanh(V @ view.T)
        x2 = jax.nn.sigmoid(U @ view.T)
        s = w.T @ (x1 * x2)                               # (1, B)
        wgt = jax.nn.softmax(s, axis=1)                   # softmax over batch (dim=1)
        contrib = wgt.reshape(-1, 1) * view
        result = contrib if result is None else result + contrib
    return result


if __name__ == "__main__":
    key = jax.random.PRNGKey(0)
    B, Hh, Ww = 8, 16, 16
    latent, hidden = 128, 64
    HW = Hh * Ww
    ks = jax.random.split(key, 6)

    x = jax.random.normal(ks[0], (B, NUM_VIEWS, Hh, Ww), jnp.float32)

    # Deterministic stand-in feature-extractor params (one Linear per view).
    feat_w = jax.random.normal(ks[1], (NUM_VIEWS, HW, latent), jnp.float32) / jnp.sqrt(
        jnp.float32(HW)
    )
    feat_b = jnp.zeros((NUM_VIEWS, latent), jnp.float32)

    # AttentionModule params, xavier_uniform_ like the PyTorch __init__.
    def xavier_uniform(k, shape):
        fan_out, fan_in = shape
        bound = (6.0 / (fan_in + fan_out)) ** 0.5
        return jax.random.uniform(k, shape, jnp.float32, -bound, bound)

    U = xavier_uniform(ks[2], (hidden, latent))
    V = xavier_uniform(ks[3], (hidden, latent))
    w = xavier_uniform(ks[4], (hidden, 1))

    out = multi_views_attention(x, feat_w, feat_b, U, V, w)
    out = jax.block_until_ready(out)

    ref = _reference(x, feat_w, feat_b, U, V, w)
    assert out.shape == (B, latent)
    # Tolerance accounts for the approx reciprocal + transcendental impl deltas.
    assert jnp.allclose(out, ref, atol=5e-3, rtol=5e-3), "mismatch vs JAX reference"
    print("KERNEL_OK")
</pallas_src>

<mosaic_0001>
module attributes {stable_mosaic.version = 11 : i64} {
  func.func @_mva_kernel(%arg0: i32, %arg1: memref<1x8x256xbf16, #tpu.memory_space<vmem>>, %arg2: memref<1x256x128xbf16, #tpu.memory_space<vmem>>, %arg3: memref<1x1x128xf32, #tpu.memory_space<vmem>>, %arg4: memref<128x128xf32, #tpu.memory_space<vmem>>, %arg5: memref<1x64xf32, #tpu.memory_space<vmem>>, %arg6: memref<8x128xf32, #tpu.memory_space<vmem>>) attributes {dimension_semantics = [#tpu.dimension_semantics<arbitrary>], iteration_bounds = array<i64: 4>, scalar_prefetch = 0 : i64, scratch_operands = 0 : i64, tpu.core_type = #tpu.core_type<tc>, window_params = [{transform_indices = @transform_0, window_bounds = array<i64: 1, 8, 256>}, {transform_indices = @transform_1, window_bounds = array<i64: 1, 256, 128>}, {transform_indices = @transform_2, window_bounds = array<i64: 1, 1, 128>}, {pipeline_mode = #tpu.pipeline_mode<synchronous>, transform_indices = @transform_3, window_bounds = array<i64: 128, 128>}, {pipeline_mode = #tpu.pipeline_mode<synchronous>, transform_indices = @transform_4, window_bounds = array<i64: 1, 64>}, {pipeline_mode = #tpu.pipeline_mode<synchronous>, transform_indices = @transform_5, window_bounds = array<i64: 8, 128>}]} {
    %c0_i32 = arith.constant 0 : i32
    %0 = arith.cmpi eq, %arg0, %c0_i32 : i32
    %1 = arith.extui %0 : i1 to i32
    %c0_i32_0 = arith.constant 0 : i32
    %2 = arith.cmpi ne, %1, %c0_i32_0 : i32
    scf.if %2 {
      %cst_23 = arith.constant 0.000000e+00 : f32
      %45 = vector.broadcast %cst_23 : f32 to vector<8x128xf32>
      %c0_24 = arith.constant 0 : index
      %c0_25 = arith.constant 0 : index
      %46 = vector.load %arg6[%c0_24, %c0_25] : memref<8x128xf32, #tpu.memory_space<vmem>>, vector<8x128xf32>
      tpu.vector_store %arg6[%c0_24, %c0_25], %45 {strides = array<i32>} : memref<8x128xf32, #tpu.memory_space<vmem>>, vector<8x128xf32>,
    } else {
    }
    %c0 = arith.constant 0 : index
    %c0_1 = arith.constant 0 : index
    %c0_2 = arith.constant 0 : index
    %3 = vector.load %arg1[%c0, %c0_1, %c0_2] : memref<1x8x256xbf16, #tpu.memory_space<vmem>>, vector<1x8x256xbf16>
    %4 = vector.shape_cast %3 : vector<1x8x256xbf16> to vector<8x256xbf16>
    %c0_3 = arith.constant 0 : index
    %c0_4 = arith.constant 0 : index
    %c0_5 = arith.constant 0 : index
    %5 = vector.load %arg2[%c0_3, %c0_4, %c0_5] : memref<1x256x128xbf16, #tpu.memory_space<vmem>>, vector<1x256x128xbf16>
    %6 = vector.shape_cast %5 : vector<1x256x128xbf16> to vector<256x128xbf16>
    %cst = arith.constant dense<0.000000e+00> : vector<8x128xf32>
    %7 = tpu.matmul %4, %6, %cst {dimension_numbers = #tpu.dot_dimension_numbers<[1], [0], [0], [1], [0, 0, 1, 1], [], []>} : vector<8x256xbf16>, vector<256x128xbf16>, vector<8x128xf32> -> vector<8x128xf32>
    %c0_6 = arith.constant 0 : index
    %c0_7 = arith.constant 0 : index
    %c0_8 = arith.constant 0 : index
    %8 = vector.load %arg3[%c0_6, %c0_7, %c0_8] : memref<1x1x128xf32, #tpu.memory_space<vmem>>, vector<1x1x128xf32>
    %9 = vector.shape_cast %8 : vector<1x1x128xf32> to vector<1x128xf32>
    %10 = vector.broadcast %9 : vector<1x128xf32> to vector<8x128xf32>
    %11 = arith.addf %7, %10 : vector<8x128xf32>
    %cst_9 = arith.constant 0.000000e+00 : f32
    %12 = vector.broadcast %cst_9 : f32 to vector<8x128xf32>
    %13 = arith.maximumf %11, %12 : vector<8x128xf32>
    %c0_10 = arith.constant 0 : index
    %c0_11 = arith.constant 0 : index
    %14 = vector.load %arg4[%c0_10, %c0_11] : memref<128x128xf32, #tpu.memory_space<vmem>>, vector<128x128xf32>
    %cst_12 = arith.constant dense<0.000000e+00> : vector<8x128xf32>
    %15 = tpu.matmul %13, %14, %cst_12 {dimension_numbers = #tpu.dot_dimension_numbers<[1], [0], [0], [1], [0, 0, 1, 1], [], []>} : vector<8x128xf32>, vector<128x128xf32>, vector<8x128xf32> -> vector<8x128xf32>
    %16 = vector.extract_strided_slice %15 {offsets = [0, 0], sizes = [8, 64], strides = [1, 1]} : vector<8x128xf32> to vector<8x64xf32>
    %17 = math.tanh %16 : vector<8x64xf32>
    %18 = vector.extract_strided_slice %15 {offsets = [0, 64], sizes = [8, 64], strides = [1, 1]} : vector<8x128xf32> to vector<8x64xf32>
    %19 = arith.negf %18 : vector<8x64xf32>
    %20 = math.exp %19 : vector<8x64xf32>
    %cst_13 = arith.constant 1.000000e+00 : f32
    %21 = vector.broadcast %cst_13 : f32 to vector<8x64xf32>
    %22 = arith.addf %21, %20 : vector<8x64xf32>
    %23 = arith.divf %21, %22 : vector<8x64xf32>
    %c0_14 = arith.constant 0 : index
    %c0_15 = arith.constant 0 : index
    %24 = vector.load %arg5[%c0_14, %c0_15] : memref<1x64xf32, #tpu.memory_space<vmem>>, vector<1x64xf32>
    %25 = arith.mulf %17, %23 : vector<8x64xf32>
    %26 = vector.broadcast %24 : vector<1x64xf32> to vector<8x64xf32>
    %27 = arith.mulf %26, %25 : vector<8x64xf32>
    %cst_16 = arith.constant dense<0.000000e+00> : vector<8xf32>
    %28 = vector.multi_reduction <add>, %27, %cst_16 [1] : vector<8x64xf32> to vector<8xf32>
    %29 = vector.shape_cast %28 : vector<8xf32> to vector<8x1xf32>
    %cst_17 = arith.constant dense<0xFF800000> : vector<1xf32>
    %30 = vector.multi_reduction <maximumf>, %29, %cst_17 [0] : vector<8x1xf32> to vector<1xf32>
    %31 = vector.shape_cast %30 : vector<1xf32> to vector<1x1xf32>
    %32 = vector.broadcast %31 : vector<1x1xf32> to vector<8x1xf32>
    %33 = arith.subf %29, %32 : vector<8x1xf32>
    %34 = math.exp %33 : vector<8x1xf32>
    %cst_18 = arith.constant dense<0.000000e+00> : vector<1xf32>
    %35 = vector.multi_reduction <add>, %34, %cst_18 [0] : vector<8x1xf32> to vector<1xf32>
    %36 = vector.shape_cast %35 : vector<1xf32> to vector<1x1xf32>
    %37 = tpu.reciprocal %36 {approx = true} : vector<1x1xf32> -> vector<1x1xf32>
    %38 = vector.broadcast %37 : vector<1x1xf32> to vector<8x1xf32>
    %39 = arith.mulf %34, %38 : vector<8x1xf32>
    %c0_19 = arith.constant 0 : index
    %c0_20 = arith.constant 0 : index
    %40 = vector.load %arg6[%c0_19, %c0_20] : memref<8x128xf32, #tpu.memory_space<vmem>>, vector<8x128xf32>
    %41 = vector.broadcast %39 : vector<8x1xf32> to vector<8x128xf32>
    %42 = arith.mulf %41, %13 : vector<8x128xf32>
    %43 = arith.addf %40, %42 : vector<8x128xf32>
    %c0_21 = arith.constant 0 : index
    %c0_22 = arith.constant 0 : index
    %44 = vector.load %arg6[%c0_21, %c0_22] : memref<8x128xf32, #tpu.memory_space<vmem>>, vector<8x128xf32>
    tpu.vector_store %arg6[%c0_21, %c0_22], %43 {strides = array<i32>} : memref<8x128xf32, #tpu.memory_space<vmem>>, vector<8x128xf32>,
    return
  }
  func.func @transform_0(%arg0: i32) -> (i32, i32, i32) {
    %c0_i32 = arith.constant 0 : i32
    %c0_i32_0 = arith.constant 0 : i32
    %c0_i32_1 = arith.constant 0 : i32
    return %arg0, %c0_i32, %c0_i32_0 : i32, i32, i32
  }
  func.func @transform_1(%arg0: i32) -> (i32, i32, i32) {
    %c0_i32 = arith.constant 0 : i32
    %c0_i32_0 = arith.constant 0 : i32
    %c0_i32_1 = arith.constant 0 : i32
    return %arg0, %c0_i32, %c0_i32_0 : i32, i32, i32
  }
  func.func @transform_2(%arg0: i32) -> (i32, i32, i32) {
    %c0_i32 = arith.constant 0 : i32
    %c0_i32_0 = arith.constant 0 : i32
    %c0_i32_1 = arith.constant 0 : i32
    return %arg0, %c0_i32, %c0_i32_0 : i32, i32, i32
  }
  func.func @transform_3(%arg0: i32) -> (i32, i32) {
    %c0_i32 = arith.constant 0 : i32
    %c0_i32_0 = arith.constant 0 : i32
    %c0_i32_1 = arith.constant 0 : i32
    return %c0_i32, %c0_i32_0 : i32, i32
  }
  func.func @transform_4(%arg0: i32) -> (i32, i32) {
    %c0_i32 = arith.constant 0 : i32
    %c0_i32_0 = arith.constant 0 : i32
    %c0_i32_1 = arith.constant 0 : i32
    return %c0_i32, %c0_i32_0 : i32, i32
  }
  func.func @transform_5(%arg0: i32) -> (i32, i32) {
    %c0_i32 = arith.constant 0 : i32
    %c0_i32_0 = arith.constant 0 : i32
    %c0_i32_1 = arith.constant 0 : i32
    return %c0_i32, %c0_i32_0 : i32, i32
  }
}

</mosaic_0001>

<llo_original>
// kernel: tpu_custom_call.1
$region0: #{tpu_custom_call.1}
  #allocation0 [shape = 'u32[]', space=smem, size = 0x4, offset = 0x4, fixed_abs, tag = 'smem constant byte address 0x4 - core index']
  #allocation1 [shape = 'u32[144,128]{1,0:T(1,128)}', space=vmem, size = 0x12000, scoped, tag = 'internal scratch']
  %s0 = inlined_call_operand.hbm [shape: bf16[4,8,256], index: 0, kind: input, shape index: {}]
  %s1 = inlined_call_operand.hbm [shape: bf16[4,256,128], index: 1, kind: input, shape index: {}]
  %s2 = inlined_call_operand.vmem [shape: f32[4,1,128], index: 2, kind: input, shape index: {}]
  %s3 = inlined_call_operand.hbm [shape: f32[128,128], index: 3, kind: input, shape index: {}]
  %s4 = inlined_call_operand.vmem [shape: f32[1,64], index: 4, kind: input, shape index: {}]
  %s5 = inlined_call_operand.hbm [shape: f32[8,128], index: 5, kind: output, shape index: {}]
  %s6 = sld [smem:[#allocation0]]
  $region69: #{tpu_custom_call.1} parent=0
    _
  %s8 = ssub.s32 1, %s6
  %s9 = scalar_select 0, %s8, %s6
  $region1: #{tpu_custom_call.1} parent=0
    #allocation2 [shape = 'u8[8192]{0}', space=vmem, size = 0x2000, scoped, tag = 'input window, operand 0']
    #allocation3 [shape = 's32[2]{0}', space=sflag, size = 0x8, scoped, tag = 'scoped memory for tpu_custom_call.1']
    #allocation4 [shape = 's32[2]{0}', space=sflag, size = 0x8, scoped, tag = 'scoped memory for tpu_custom_call.1']
    #allocation5 [shape = 'u8[131072]{0}', space=vmem, size = 0x20000, scoped, tag = 'input window, operand 1']
    #allocation6 [shape = 's32[2]{0}', space=sflag, size = 0x8, scoped, tag = 'scoped memory for tpu_custom_call.1']
    #allocation7 [shape = 'u8[65536]{0}', space=vmem, size = 0x10000, scoped, tag = 'input window, operand 3, single buffered']
    #allocation8 [shape = 'u8[4096]{0}', space=vmem, size = 0x1000, scoped, tag = 'output window, operand 0, single buffered']
    %10 = vsyncpa [#allocation3], 0
    %s11 = scalar_lea.sflag [#allocation3], 1
    %12 = vsyncpa %s11, 0
    %13 = vsyncpa [#allocation6], 0
    %s14 = scalar_lea.sflag [#allocation6], 1
    %15 = vsyncpa %s14, 0
    %16 = vsyncpa [#allocation4], 0
    loop: start=0, step=1, limit=6
    $region2: #{tpu_custom_call.1} parent=1 // loop_pre_header
      _
    $region3: #{tpu_custom_call.1} parent=1 // loop_header
      %s18 = sphi 0, %s22
      %p19 = scmp.ge.s32.totalorder %s18, 6
      %s28 = sphi 0, %s30
      %s31 = sphi 0, %s28
      %s32 = sphi 0, %s31
      %s48 = sphi 0, %s32
      %s54 = sphi 0, %s56
      %s57 = sphi 0, %s54
      %s58 = sphi 0, %s57
      %s74 = sphi 0, %s58
      %s80 = sphi 0, %s82
      %s83 = sphi 0, %s80
      %s84 = sphi 0, %s83
      %s100 = sphi 0, %s84
      %s104 = sphi 0, %s104
      %s106 = sphi 0, %s104
      %s107 = sphi 0, %s106
      %s121 = sphi 0, %s107
      %s125 = sphi 0, %s125
      %s127 = sphi 0, %s125
      %s128 = sphi 0, %s127
      %s142 = sphi 0, %s128
      %s146 = sphi 0, %s146
      %s148 = sphi 0, %s146
      %s149 = sphi 0, %s148
      %s163 = sphi 0, %s149
    $region4: #{tpu_custom_call.1} parent=1 // loop_header_branch
      %21 = sbr.rel (%p19) target = $region8
    $region5: #{tpu_custom_call.1} parent=1 // loop_body
      %s23 = ssub.s32 %s18, 1
      %s24 = ssub.s32 %s18, 2
      %s25 = sadd.s32 %s18, 1
      %s26 = ssub.s32 %s18, %s25
      %p27 = scmp.eq.s32.totalorder %s26, 0
      %s29 = sadd.s32 %s28, 1
      %s30 = scalar_select %p27, %s28, %s29
      %p33 = pneg %p27
      %p34 = scmp.eq.s32.totalorder %s18, 3
      %p35 = por %p33, %p34
      %p36 = scmp.ne.s32.totalorder %s28, %s31
      %p37 = scmp.eq.s32.totalorder %s18, 0
      %p38 = por %p36, %p37
      %p39 = scmp.ne.s32.totalorder %s28, %s31
      %p40 = scmp.eq.s32.totalorder %s23, 3
      %p41 = por %p39, %p40
      %p42 = scmp.ne.s32.totalorder %s31, %s32
      %p43 = scmp.eq.s32.totalorder %s23, 0
      %p44 = por %p42, %p43
      %p45 = scmp.ne.s32.totalorder %s31, %s32
      %p46 = scmp.eq.s32.totalorder %s24, 3
      %p47 = por %p45, %p46
      %p49 = scmp.ne.s32.totalorder %s32, %s48
      %p50 = scmp.eq.s32.totalorder %s24, 0
      %p51 = por %p49, %p50
      %s52 = ssub.s32 %s18, %s25
      %p53 = scmp.eq.s32.totalorder %s52, 0
      %s55 = sadd.s32 %s54, 1
      %s56 = scalar_select %p53, %s54, %s55
      %p59 = pneg %p53
      %p60 = scmp.eq.s32.totalorder %s18, 3
      %p61 = por %p59, %p60
      %p62 = scmp.ne.s32.totalorder %s54, %s57
      %p63 = scmp.eq.s32.totalorder %s18, 0
      %p64 = por %p62, %p63
      %p65 = scmp.ne.s32.totalorder %s54, %s57
      %p66 = scmp.eq.s32.totalorder %s23, 3
      %p67 = por %p65, %p66
      %p68 = scmp.ne.s32.totalorder %s57, %s58
      %p69 = scmp.eq.s32.totalorder %s23, 0
      %p70 = por %p68, %p69
      %p71 = scmp.ne.s32.totalorder %s57, %s58
      %p72 = scmp.eq.s32.totalorder %s24, 3
      %p73 = por %p71, %p72
      %p75 = scmp.ne.s32.totalorder %s58, %s74
      %p76 = scmp.eq.s32.totalorder %s24, 0
      %p77 = por %p75, %p76
      %s78 = ssub.s32 %s18, %s25
      %p79 = scmp.eq.s32.totalorder %s78, 0
      %s81 = sadd.s32 %s80, 1
      %s82 = scalar_select %p79, %s80, %s81
      %p85 = pneg %p79
      %p86 = scmp.eq.s32.totalorder %s18, 3
      %p87 = por %p85, %p86
      %p88 = scmp.ne.s32.totalorder %s80, %s83
      %p89 = scmp.eq.s32.totalorder %s18, 0
      %p90 = por %p88, %p89
      %p91 = scmp.ne.s32.totalorder %s80, %s83
      %p92 = scmp.eq.s32.totalorder %s23, 3
      %p93 = por %p91, %p92
      %p94 = scmp.ne.s32.totalorder %s83, %s84
      %p95 = scmp.eq.s32.totalorder %s23, 0
      %p96 = por %p94, %p95
      %p97 = scmp.ne.s32.totalorder %s83, %s84
      %p98 = scmp.eq.s32.totalorder %s24, 3
      %p99 = por %p97, %p98
      %p101 = scmp.ne.s32.totalorder %s84, %s100
      %p102 = scmp.eq.s32.totalorder %s24, 0
      %p103 = por %p101, %p102
      %s105 = sadd.s32 %s104, 1
      %p108 = scmp.eq.s32.totalorder %s18, 3
      %p109 = scmp.ne.s32.totalorder %s104, %s106
      %p110 = scmp.eq.s32.totalorder %s18, 0
      %p111 = por %p109, %p110
      %p112 = scmp.ne.s32.totalorder %s104, %s106
      %p113 = scmp.eq.s32.totalorder %s23, 3
      %p114 = por %p112, %p113
      %p115 = scmp.ne.s32.totalorder %s106, %s107
      %p116 = scmp.eq.s32.totalorder %s23, 0
      %p117 = por %p115, %p116
      %p118 = scmp.ne.s32.totalorder %s106, %s107
      %p119 = scmp.eq.s32.totalorder %s24, 3
      %p120 = por %p118, %p119
      %p122 = scmp.ne.s32.totalorder %s107, %s121
      %p123 = scmp.eq.s32.totalorder %s24, 0
      %p124 = por %p122, %p123
      %s126 = sadd.s32 %s125, 1
      %p129 = scmp.eq.s32.totalorder %s18, 3
      %p130 = scmp.ne.s32.totalorder %s125, %s127
      %p131 = scmp.eq.s32.totalorder %s18, 0
      %p132 = por %p130, %p131
      %p133 = scmp.ne.s32.totalorder %s125, %s127
      %p134 = scmp.eq.s32.totalorder %s23, 3
      %p135 = por %p133, %p134
      %p136 = scmp.ne.s32.totalorder %s127, %s128
      %p137 = scmp.eq.s32.totalorder %s23, 0
      %p138 = por %p136, %p137
      %p139 = scmp.ne.s32.totalorder %s127, %s128
      %p140 = scmp.eq.s32.totalorder %s24, 3
      %p141 = por %p139, %p140
      %p143 = scmp.ne.s32.totalorder %s128, %s142
      %p144 = scmp.eq.s32.totalorder %s24, 0
      %p145 = por %p143, %p144
      %s147 = sadd.s32 %s146, 1
      %p150 = scmp.eq.s32.totalorder %s18, 3
      %p151 = scmp.ne.s32.totalorder %s146, %s148
      %p152 = scmp.eq.s32.totalorder %s18, 0
      %p153 = por %p151, %p152
      %p154 = scmp.ne.s32.totalorder %s146, %s148
      %p155 = scmp.eq.s32.totalorder %s23, 3
      %p156 = por %p154, %p155
      %p157 = scmp.ne.s32.totalorder %s148, %s149
      %p158 = scmp.eq.s32.totalorder %s23, 0
      %p159 = por %p157, %p158
      %p160 = scmp.ne.s32.totalorder %s148, %s149
      %p161 = scmp.eq.s32.totalorder %s24, 3
      %p162 = por %p160, %p161
      %p164 = scmp.ne.s32.totalorder %s149, %s163
      %p165 = scmp.eq.s32.totalorder %s24, 0
      %p166 = por %p164, %p165
      %p167 = scmp.le.s32.totalorder 1, %s18
      %p168 = scmp.lt.s32.totalorder %s18, 5
      %p169 = pnand %p167, %p168
      %p170 = pneg %p169
      // Predicated region
      $region9: #{tpu_custom_call.1} parent=5 // pred_check
        _
      $region10: #{tpu_custom_call.1} parent=5 // pred_check_branch
        %172 = sbr.rel (%p169) target = $region12
      $region11: #{tpu_custom_call.1} parent=5 // pred_region
        %s173 = ssub.s32 %s18, 1
        // Predicated region
        $region13: #{tpu_custom_call.1} parent=11 // pred_check
          %p174 = pneg %p117
        $region14: #{tpu_custom_call.1} parent=11 // pred_check_branch
          %176 = sbr.rel (%p174) target = $region16
        $region15: #{tpu_custom_call.1} parent=11 // pred_region
          %s178 = ssub.s32 2048, 2048
          %179 = vsyncadd [#allocation6], %s178
          %s180 = sshll.u32 [#allocation7], 4
          %s181 = int_to_ptr.vmem [resolvable:$true] %s180
          %186 = dma.hbm_to_vmem [thread:$0]  %s3, 2048, %s181, [#allocation6], 128, 128, 8
        $region16: #{tpu_custom_call.1} parent=11 // pred_fallthru
          _
        // Predicated region
        $region17: #{tpu_custom_call.1} parent=11 // pred_check
          %p187 = pneg %p138
        $region18: #{tpu_custom_call.1} parent=11 // pred_check_branch
          %189 = sbr.rel (%p187) target = $region20
        $region19: #{tpu_custom_call.1} parent=11 // pred_region
          _
        $region20: #{tpu_custom_call.1} parent=11 // pred_fallthru
          _
      $region12: #{tpu_custom_call.1} parent=5 // pred_fallthru
        _
      %p190 = scmp.lt.s32.totalorder %s18, 4
      // Predicated region
      $region21: #{tpu_custom_call.1} parent=5 // pred_check
        %p191 = pneg %p190
      $region22: #{tpu_custom_call.1} parent=5 // pred_check_branch
        %193 = sbr.rel (%p191) target = $region24
      $region23: #{tpu_custom_call.1} parent=5 // pred_region
        // Predicated region
        $region25: #{tpu_custom_call.1} parent=23 // pred_check
          %p194 = pneg %p38
        $region26: #{tpu_custom_call.1} parent=23 // pred_check_branch
          %196 = sbr.rel (%p194) target = $region28
        $region27: #{tpu_custom_call.1} parent=23 // pred_region
          %s197 = sand.u32 %s28, 1
          %s198 = scalar_lea.sflag [#allocation3], %s197
          %s199 = sand.u32 %s28, 1
          %s200 = smul.addr %s199, 8
          %s201 = scalar_lea.vmem [#allocation2], %s200
          %s203 = ssub.s32 128, 128
          %204 = vsyncadd %s198, %s203
          %s205 = smul.addr %s18, 2
          %s206 = smul.addr %s205, 64
          %s207 = scalar_lea.hbm %s0, %s206
          %s209 = sshll.u32 %s201, 4
          %s210 = int_to_ptr.vmem [resolvable:$true] %s209
          %212 = dma.hbm_to_vmem [thread:$0]  %s207, 128, %s210, %s198
        $region28: #{tpu_custom_call.1} parent=23 // pred_fallthru
          _
        // Predicated region
        $region29: #{tpu_custom_call.1} parent=23 // pred_check
          %p213 = pneg %p64
        $region30: #{tpu_custom_call.1} parent=23 // pred_check_branch
          %215 = sbr.rel (%p213) target = $region32
        $region31: #{tpu_custom_call.1} parent=23 // pred_region
          %s216 = sand.u32 %s18, 1
          %s217 = scalar_lea.sflag [#allocation6], %s216
          %s218 = sand.u32 %s54, 1
          %s219 = smul.addr %s218, 128
          %s220 = scalar_lea.vmem [#allocation5], %s219
          %s222 = ssub.s32 2048, 2048
          %223 = vsyncadd %s217, %s222
          %s224 = smul.addr %s18, 32
          %s225 = smul.addr %s224, 64
          %s226 = scalar_lea.hbm %s1, %s225
          %s227 = sshll.u32 %s220, 4
          %s228 = int_to_ptr.vmem [resolvable:$true] %s227
          %233 = dma.hbm_to_vmem [thread:$0]  %s226, 2048, %s228, %s217, 64, 64, 4
        $region32: #{tpu_custom_call.1} parent=23 // pred_fallthru
          _
        // Predicated region
        $region33: #{tpu_custom_call.1} parent=23 // pred_check
          %p234 = pneg %p90
        $region34: #{tpu_custom_call.1} parent=23 // pred_check_branch
          %236 = sbr.rel (%p234) target = $region36
        $region35: #{tpu_custom_call.1} parent=23 // pred_region
          %p237 = scmp.lt.s32.totalorder %s18, 3
          %s238 = scalar_select %p237, %s18, 3
          %s239 = scalar_lea.vmem %s2, %s238
        $region36: #{tpu_custom_call.1} parent=23 // pred_fallthru
          _
      $region24: #{tpu_custom_call.1} parent=5 // pred_fallthru
        _
      %p240 = scmp.le.s32.totalorder 1, %s18
      %p241 = scmp.lt.s32.totalorder %s18, 5
      %p242 = pnand %p240, %p241
      %p243 = pneg %p242
      // Predicated region
      $region37: #{tpu_custom_call.1} parent=5 // pred_check
        _
      $region38: #{tpu_custom_call.1} parent=5 // pred_check_branch
        %245 = sbr.rel (%p242) target = $region40
      $region39: #{tpu_custom_call.1} parent=5 // pred_region
        %s246 = ssub.s32 %s18, 1
        %s247 = sand.u32 %s31, 1
        %s248 = scalar_lea.sflag [#allocation3], %s247
        %s249 = sand.u32 %s31, 1
        %s250 = smul.addr %s249, 8
        %s251 = scalar_lea.vmem [#allocation2], %s250
        // Predicated region
        $region41: #{tpu_custom_call.1} parent=39 // pred_check
          %p252 = pneg %p44
        $region42: #{tpu_custom_call.1} parent=39 // pred_check_branch
          %254 = sbr.rel (%p252) target = $region44
        $region43: #{tpu_custom_call.1} parent=39 // pred_region
          %255 = dma.done %s248, 128
        $region44: #{tpu_custom_call.1} parent=39 // pred_fallthru
          _
        %s256 = sand.u32 %s23, 1
        %s257 = scalar_lea.sflag [#allocation6], %s256
        %s258 = sand.u32 %s57, 1
        %s259 = smul.addr %s258, 128
        %s260 = scalar_lea.vmem [#allocation5], %s259
        // Predicated region
        $region45: #{tpu_custom_call.1} parent=39 // pred_check
          %p261 = pneg %p70
        $region46: #{tpu_custom_call.1} parent=39 // pred_check_branch
          %263 = sbr.rel (%p261) target = $region48
        $region47: #{tpu_custom_call.1} parent=39 // pred_region
          %264 = dma.done %s257, 2048
        $region48: #{tpu_custom_call.1} parent=39 // pred_fallthru
          _
        // Predicated region
        $region49: #{tpu_custom_call.1} parent=39 // pred_check
          %p265 = pneg %p117
        $region50: #{tpu_custom_call.1} parent=39 // pred_check_branch
          %267 = sbr.rel (%p265) target = $region52
        $region51: #{tpu_custom_call.1} parent=39 // pred_region
          %268 = dma.done [#allocation6], 2048
        $region52: #{tpu_custom_call.1} parent=39 // pred_fallthru
          _
        %s269 = sand.u32 %s31, 1
        %s270 = scalar_lea.sflag [#allocation3], %s269
        %s271 = sand.u32 %s31, 1
        %s272 = smul.addr %s271, 8
        %s273 = scalar_lea.vmem [#allocation2], %s272
        %p274 = pneg %p44
        %p275 = pneg %p41
        %s276 = sand.u32 %s23, 1
        %s277 = scalar_lea.sflag [#allocation6], %s276
        %s278 = sand.u32 %s57, 1
        %s279 = smul.addr %s278, 128
        %s280 = scalar_lea.vmem [#allocation5], %s279
        %p281 = pneg %p70
        %p282 = pneg %p67
        %p283 = scmp.lt.s32.totalorder %s23, 3
        %s284 = scalar_select %p283, %s23, 3
        %s285 = scalar_lea.vmem %s2, %s284
        %p286 = pneg %p96
        %p287 = pneg %p93
        %p288 = pneg %p117
        %p289 = pneg %p114
        %p290 = pneg %p138
        %p291 = pneg %p135
        %p292 = pneg %p159
        %p293 = pneg %p156
        %p294 = scmp.lt.s32.totalorder %s23, 3
        %s295 = scalar_select %p294, %s23, 3
        %s296 = scalar_lea.vmem %s2, %s295
        %p298 = scmp.eq.s32.totalorder %s23, 0
        // Predicated region
        $region53: #{tpu_custom_call.1} parent=39 // pred_check
          %p299 = pneg %p298
        $region54: #{tpu_custom_call.1} parent=39 // pred_check_branch
          %301 = sbr.rel (%p299) target = $region56
        $region55: #{tpu_custom_call.1} parent=39 // pred_region
          %302 = vst [vmem:[#allocation8] sm:$0xff] 0.0
        $region56: #{tpu_custom_call.1} parent=39 // pred_fallthru
          _
        %v303 = vld [vmem:[%s251] sm:$0xff]
        %v304 = vld [vmem:[%s260] sm:$0xf]
        %v305 = vld [vmem:[%s260 + $0x4] sm:$0xf]
        %v306 = vld [vmem:[%s260 + $0x8] sm:$0xf]
        %v307 = vld [vmem:[%s260 + $0xc] sm:$0xf]
        %v308 = vld [vmem:[%s260 + $0x10] sm:$0xf]
        %v309 = vld [vmem:[%s260 + $0x14] sm:$0xf]
        %v310 = vld [vmem:[%s260 + $0x18] sm:$0xf]
        %v311 = vld [vmem:[%s260 + $0x1c] sm:$0xf]
        %v312 = vld [vmem:[%s260 + $0x20] sm:$0xf]
        %v313 = vld [vmem:[%s260 + $0x24] sm:$0xf]
        %v314 = vld [vmem:[%s260 + $0x28] sm:$0xf]
        %v315 = vld [vmem:[%s260 + $0x2c] sm:$0xf]
        %v316 = vld [vmem:[%s260 + $0x30] sm:$0xf]
        %v317 = vld [vmem:[%s260 + $0x34] sm:$0xf]
        %v318 = vld [vmem:[%s260 + $0x38] sm:$0xf]
        %v319 = vld [vmem:[%s260 + $0x3c] sm:$0xf]
        %v320 = vld [vmem:[%s260 + $0x40] sm:$0xf]
        %v321 = vld [vmem:[%s260 + $0x44] sm:$0xf]
        %v322 = vld [vmem:[%s260 + $0x48] sm:$0xf]
        %v323 = vld [vmem:[%s260 + $0x4c] sm:$0xf]
        %v324 = vld [vmem:[%s260 + $0x50] sm:$0xf]
        %v325 = vld [vmem:[%s260 + $0x54] sm:$0xf]
        %v326 = vld [vmem:[%s260 + $0x58] sm:$0xf]
        %v327 = vld [vmem:[%s260 + $0x5c] sm:$0xf]
        %v328 = vld [vmem:[%s260 + $0x60] sm:$0xf]
        %v329 = vld [vmem:[%s260 + $0x64] sm:$0xf]
        %v330 = vld [vmem:[%s260 + $0x68] sm:$0xf]
        %v331 = vld [vmem:[%s260 + $0x6c] sm:$0xf]
        %v332 = vld [vmem:[%s260 + $0x70] sm:$0xf]
        %v333 = vld [vmem:[%s260 + $0x74] sm:$0xf]
        %v334 = vld [vmem:[%s260 + $0x78] sm:$0xf]
        %v335 = vld [vmem:[%s260 + $0x7c] sm:$0xf]
        %v336 = vld [vmem:[%s296] sm:$0x1]
        %v338 = vlaneseq
        %v339 = vshrl.u32 %v338, 7
        %v340 = vsub.s32 0, %v339
        %v341 = vrot.slane %v336, %v340
        %v344 = vunpack.c.l.b16 %v303
        %v345 = vunpack.c.h.b16 %v303
        %v346 = vpack.c.b16 %v344, %v344
        %v347 = vpack.c.b16 %v345, %v345
        %v382 = vunpack.c.l.b16 %v304
        %v383 = vunpack.c.l.b16 %v305
        %v384 = vunpack.c.l.b16 %v306
        %v385 = vunpack.c.l.b16 %v307
        %v386 = vunpack.c.l.b16 %v308
        %v387 = vunpack.c.l.b16 %v309
        %v388 = vunpack.c.l.b16 %v310
        %v389 = vunpack.c.l.b16 %v311
        %v390 = vunpack.c.l.b16 %v312
        %v391 = vunpack.c.l.b16 %v313
        %v392 = vunpack.c.l.b16 %v314
        %v393 = vunpack.c.l.b16 %v315
        %v394 = vunpack.c.l.b16 %v316
        %v395 = vunpack.c.l.b16 %v317
        %v396 = vunpack.c.l.b16 %v318
        %v397 = vunpack.c.l.b16 %v319
        %v398 = vunpack.c.l.b16 %v320
        %v399 = vunpack.c.l.b16 %v321
        %v400 = vunpack.c.l.b16 %v322
        %v401 = vunpack.c.l.b16 %v323
        %v402 = vunpack.c.l.b16 %v324
        %v403 = vunpack.c.l.b16 %v325
        %v404 = vunpack.c.l.b16 %v326
        %v405 = vunpack.c.l.b16 %v327
        %v406 = vunpack.c.l.b16 %v328
        %v407 = vunpack.c.l.b16 %v329
        %v408 = vunpack.c.l.b16 %v330
        %v409 = vunpack.c.l.b16 %v331
        %v410 = vunpack.c.l.b16 %v332
        %v411 = vunpack.c.l.b16 %v333
        %v412 = vunpack.c.l.b16 %v334
        %v413 = vunpack.c.l.b16 %v335
        %v414 = vpack.c.b16 %v383, %v382
        %v415 = vpack.c.b16 %v385, %v384
        %v416 = vpack.c.b16 %v387, %v386
        %v417 = vpack.c.b16 %v389, %v388
        %v418 = vpack.c.b16 %v391, %v390
        %v419 = vpack.c.b16 %v393, %v392
        %v420 = vpack.c.b16 %v395, %v394
        %v421 = vpack.c.b16 %v397, %v396
        %v422 = vpack.c.b16 %v399, %v398
        %v423 = vpack.c.b16 %v401, %v400
        %v424 = vpack.c.b16 %v403, %v402
        %v425 = vpack.c.b16 %v405, %v404
        %v426 = vpack.c.b16 %v407, %v406
        %v427 = vpack.c.b16 %v409, %v408
        %v428 = vpack.c.b16 %v411, %v410
        %v429 = vpack.c.b16 %v413, %v412
        %446 = vmatprep.subr.bf16.mxu0 0
        %447 = vmatpush1.bf16.msra.mxu0 %v414
        %448 = vmatprep.subr.bf16.mxu0 0
        %449 = vmatpush1.bf16.msra.mxu0 %v415
        %450 = vmatprep.subr.bf16.mxu0 0
        %451 = vmatpush1.bf16.msra.mxu0 %v416
        %452 = vmatprep.subr.bf16.mxu0 0
        %453 = vmatpush1.bf16.msra.mxu0 %v417
        %454 = vmatprep.subr.bf16.mxu0 0
        %455 = vmatpush1.bf16.msra.mxu0 %v418
        %456 = vmatprep.subr.bf16.mxu0 0
        %457 = vmatpush1.bf16.msra.mxu0 %v419
        %458 = vmatprep.subr.bf16.mxu0 0
        %459 = vmatpush1.bf16.msra.mxu0 %v420
        %460 = vmatprep.subr.bf16.mxu0 0
        %461 = vmatpush1.bf16.msra.mxu0 %v421
        %462 = vmatprep.subr.bf16.mxu0 0
        %463 = vmatpush1.bf16.msra.mxu0 %v422
        %464 = vmatprep.subr.bf16.mxu0 0
        %465 = vmatpush1.bf16.msra.mxu0 %v423
        %466 = vmatprep.subr.bf16.mxu0 0
        %467 = vmatpush1.bf16.msra.mxu0 %v424
        %468 = vmatprep.subr.bf16.mxu0 0
        %469 = vmatpush1.bf16.msra.mxu0 %v425
        %470 = vmatprep.subr.bf16.mxu0 0
        %471 = vmatpush1.bf16.msra.mxu0 %v426
        %472 = vmatprep.subr.bf16.mxu0 0
        %473 = vmatpush1.bf16.msra.mxu0 %v427
        %474 = vmatprep.subr.bf16.mxu0 0
        %475 = vmatpush1.bf16.msra.mxu0 %v428
        %476 = vmatprep.subr.bf16.mxu0 0
        %477 = vmatpush1.bf16.msra.mxu0 %v429
        %478 = vmatprep.mubr.bf16.mxu0 %v347
        %479 = vmatmul.mubr.bf16.gmra.mrb[0].mxu0 %v346
        %v480 = vpop.f32.mrb[0].mxu0
        %v481 = vadd.f32 %v341, %v480
        %v482 = vpop.f32.mrb[0].mxu0
        %v483 = vpop.f32.mrb[0].mxu0
        %v484 = vpop.f32.mrb[0].mxu0
        %485 = vdwg.mxu0
        %v486 = vmax.f32 %v481, 0.0
        %v487 = vld [vmem:[#allocation7] sm:$0xff]
        %v488 = vld [vmem:[#allocation7 + $0x8] sm:$0xff]
        %v489 = vld [vmem:[#allocation7 + $0x10] sm:$0xff]
        %v490 = vld [vmem:[#allocation7 + $0x18] sm:$0xff]
        %v491 = vld [vmem:[#allocation7 + $0x20] sm:$0xff]
        %v492 = vld [vmem:[#allocation7 + $0x28] sm:$0xff]
        %v493 = vld [vmem:[#allocation7 + $0x30] sm:$0xff]
        %v494 = vld [vmem:[#allocation7 + $0x38] sm:$0xff]
        %v495 = vld [vmem:[#allocation7 + $0x40] sm:$0xff]
        %v496 = vld [vmem:[#allocation7 + $0x48] sm:$0xff]
        %v497 = vld [vmem:[#allocation7 + $0x50] sm:$0xff]
        %v498 = vld [vmem:[#allocation7 + $0x58] sm:$0xff]
        %v499 = vld [vmem:[#allocation7 + $0x60] sm:$0xff]
        %v500 = vld [vmem:[#allocation7 + $0x68] sm:$0xff]
        %v501 = vld [vmem:[#allocation7 + $0x70] sm:$0xff]
        %v502 = vld [vmem:[#allocation7 + $0x78] sm:$0xff]
        %503 = vmatprep.subr.mxu0 0.0
        %504 = vmatpush1.msra.mxu0 %v487
        %505 = vmatprep.subr.mxu0 0.0
        %506 = vmatpush1.msra.mxu0 %v488
        %507 = vmatprep.subr.mxu0 0.0
        %508 = vmatpush1.msra.mxu0 %v489
        %509 = vmatprep.subr.mxu0 0.0
        %510 = vmatpush1.msra.mxu0 %v490
        %511 = vmatprep.subr.mxu0 0.0
        %512 = vmatpush1.msra.mxu0 %v491
        %513 = vmatprep.subr.mxu0 0.0
        %514 = vmatpush1.msra.mxu0 %v492
        %515 = vmatprep.subr.mxu0 0.0
        %516 = vmatpush1.msra.mxu0 %v493
        %517 = vmatprep.subr.mxu0 0.0
        %518 = vmatpush1.msra.mxu0 %v494
        %519 = vmatprep.subr.mxu0 0.0
        %520 = vmatpush1.msra.mxu0 %v495
        %521 = vmatprep.subr.mxu0 0.0
        %522 = vmatpush1.msra.mxu0 %v496
        %523 = vmatprep.subr.mxu0 0.0
        %524 = vmatpush1.msra.mxu0 %v497
        %525 = vmatprep.subr.mxu0 0.0
        %526 = vmatpush1.msra.mxu0 %v498
        %527 = vmatprep.subr.mxu0 0.0
        %528 = vmatpush1.msra.mxu0 %v499
        %529 = vmatprep.subr.mxu0 0.0
        %530 = vmatpush1.msra.mxu0 %v500
        %531 = vmatprep.subr.mxu0 0.0
        %532 = vmatpush1.msra.mxu0 %v501
        %533 = vmatprep.subr.mxu0 0.0
        %534 = vmatpush1.msra.mxu0 %v502
        %535 = vmatprep.subr.mxu0 0.0
        %536 = vmatpush1.msra.mxu0 0.0
        %537 = vmatprep.subr.mxu0 0.0
        %538 = vmatpush1.msra.mxu0 0.0
        %539 = vmatprep.subr.mxu0 0.0
        %540 = vmatpush1.msra.mxu0 0.0
        %541 = vmatprep.subr.mxu0 0.0
        %542 = vmatpush1.msra.mxu0 0.0
        %543 = vmatprep.subr.mxu0 0.0
        %544 = vmatpush1.msra.mxu0 0.0
        %545 = vmatprep.subr.mxu0 0.0
        %546 = vmatpush1.msra.mxu0 0.0
        %547 = vmatprep.subr.mxu0 0.0
        %548 = vmatpush1.msra.mxu0 0.0
        %549 = vmatprep.subr.mxu0 0.0
        %550 = vmatpush1.msra.mxu0 0.0
        %551 = vmatprep.subr.mxu0 0.0
        %552 = vmatpush1.msra.mxu0 0.0
        %553 = vmatprep.subr.mxu0 0.0
        %554 = vmatpush1.msra.mxu0 0.0
        %555 = vmatprep.subr.mxu0 0.0
        %556 = vmatpush1.msra.mxu0 0.0
        %557 = vmatprep.subr.mxu0 0.0
        %558 = vmatpush1.msra.mxu0 0.0
        %559 = vmatprep.subr.mxu0 0.0
        %560 = vmatpush1.msra.mxu0 0.0
        %561 = vmatprep.subr.mxu0 0.0
        %562 = vmatpush1.msra.mxu0 0.0
        %563 = vmatprep.subr.mxu0 0.0
        %564 = vmatpush1.msra.mxu0 0.0
        %565 = vmatprep.subr.mxu0 0.0
        %566 = vmatpush1.msra.mxu0 0.0
        %567 = vmatprep.mubr.f32.mxu0 0.0
        %568 = vmatmul.mubr.f32.gmra.mrb[0].mxu0 %v486
        %v569 = vpop.f32.mrb[0].mxu0
        %v570 = vadd.f32 0.0, %v569
        %v571 = vpop.f32.mrb[0].mxu0
        %572 = vdwg.mxu0
        %v573 = vtanh.pop %v570
        %v574 = vxor.u32 %v570, 2147483648
        %v575 = vmul.f32 %v574, 1.442695
        %v576 = vpow.pop %v575
        %v577 = vadd.f32 %v576, 1.0
        %v578 = vrcp.pop %v577
        %v579 = vmul.f32 1.0, %v578
        %v580 = vld [vmem:[%s4] sm:$0x1]
        %582 = vrot.lane.b32.xlu0 %v579, 64
        %v583 = vpop.permute.xlu0 %582
        %v585 = vmul.f32 %v573, %v583
        %v587 = vlaneseq
        %v588 = vshrl.u32 %v587, 7
        %v589 = vsub.s32 0, %v588
        %v590 = vrot.slane %v580, %v589
        %v592 = vmul.f32 %v590, %v585
        %vm593 = vcmask 523264
        %v594 = vsel %vm593, %v592, 0.0
        %595 = vadd.xlane.f32.xlu0 %v594
        %v596 = vpop.xlane.xlu0 %595
        %v597 = vrot.slane %v596, 4
        %v598 = vmax.f32 %v596, %v597
        %v599 = vrot.slane %v598, 2
        %v600 = vmax.f32 %v598, %v599
        %v601 = vrot.slane %v600, 1
        %v602 = vmax.f32 %v600, %v601
        %v603 = vsub.f32 %v596, %v602
        %v604 = vmul.f32 %v603, 1.442695
        %v605 = vpow.pop %v604
        %v606 = vrot.slane %v605, 4
        %v607 = vadd.f32 %v605, %v606
        %v608 = vrot.slane %v607, 2
        %v609 = vadd.f32 %v607, %v608
        %v610 = vrot.slane %v609, 1
        %v611 = vadd.f32 %v609, %v610
        %v612 = vrcp.pop %v611
        %v613 = vmul.f32 %v605, %v612
        %v614 = vld [vmem:[#allocation8] sm:$0xff]
        %v615 = vmul.f32 %v613, %v486
        %v616 = vadd.f32 %v614, %v615
        %617 = vst [vmem:[#allocation8] sm:$0xff] %v616
        // Predicated region
        $region57: #{tpu_custom_call.1} parent=39 // pred_check
          %p618 = pneg %p156
        $region58: #{tpu_custom_call.1} parent=39 // pred_check_branch
          %620 = sbr.rel (%p618) target = $region60
        $region59: #{tpu_custom_call.1} parent=39 // pred_region
          %s622 = ssub.s32 128, 128
          %623 = vsyncadd [#allocation4], %s622
          %s625 = sshll.u32 [#allocation8], 4
          %s626 = int_to_ptr.vmem [resolvable:$true] %s625
          %628 = dma.vmem_to_hbm [thread:$0]  %s626, 128, %s5, [#allocation4]
        $region60: #{tpu_custom_call.1} parent=39 // pred_fallthru
          _
        // Predicated region
        $region61: #{tpu_custom_call.1} parent=39 // pred_check
          %p629 = pneg %p156
        $region62: #{tpu_custom_call.1} parent=39 // pred_check_branch
          %631 = sbr.rel (%p629) target = $region64
        $region63: #{tpu_custom_call.1} parent=39 // pred_region
          %632 = dma.done [#allocation4], 128
        $region64: #{tpu_custom_call.1} parent=39 // pred_fallthru
          _
      $region40: #{tpu_custom_call.1} parent=5 // pred_fallthru
        _
      %p633 = scmp.le.s32.totalorder 2, %s18
      // Predicated region
      $region65: #{tpu_custom_call.1} parent=5 // pred_check
        %p634 = pneg %p633
      $region66: #{tpu_custom_call.1} parent=5 // pred_check_branch
        %636 = sbr.rel (%p634) target = $region68
      $region67: #{tpu_custom_call.1} parent=5 // pred_region
        %s637 = ssub.s32 %s18, 2
      $region68: #{tpu_custom_call.1} parent=5 // pred_fallthru
        _
    $region6: #{tpu_custom_call.1} parent=1 // loop_footer
      %s22 = sadd.s32 1, %s18
    $region7: #{tpu_custom_call.1} parent=1 // loop_footer_branch
      %17 = sbr.rel target = $region3
    $region8: #{tpu_custom_call.1} parent=1 // loop_exit
      _
    %638 = vsyncpa [#allocation3], 1
    %s639 = scalar_lea.sflag [#allocation3], 1
    %640 = vsyncpa %s639, 1
    %641 = vsyncpa [#allocation6], 1
    %s642 = scalar_lea.sflag [#allocation6], 1
    %643 = vsyncpa %s642, 1
    %644 = vsyncpa [#allocation4], 1
    %s645 = scalar_lea.sflag [#allocation4], 1
    %646 = vsyncpa %s645, 1

</llo_original>
